<compile_context>
chip_gen: v7x
topology: tpu7x:2x2x1
jax: 0.10.0
libtpu: 0.0.40
codegen_flags: <defaults>
</compile_context>

<pallas_src>
import jax
import jax.numpy as jnp
from jax.experimental import pallas as pl
from jax.experimental.pallas import tpu as pltpu


def _round_up(x, m):
    return (x + m - 1) // m * m


# ----------------------------------------------------------------------------
# Main path: resident table in VMEM + one-hot MXU gather.
# ----------------------------------------------------------------------------
def _embedding_resident(table, x, *, block_rows=256):
    B, F = x.shape
    V, D = table.shape
    N = B * F

    # Lane-dense output: pad the embedding dim up to a multiple of 128 lanes.
    D_pad = _round_up(max(D, 128), 128)

    # Rows gathered per grid step: multiple of 8 sublanes, capped so the
    # (R, V) one-hot block stays a few MiB even for larger vocabularies.
    r_cap = max(8, ((4 << 20) // (V * 4)) // 8 * 8)
    R = min(_round_up(block_rows, 8), r_cap, _round_up(N, 8))
    n_steps = pl.cdiv(N, R)
    N_pad = n_steps * R

    # Clip indices (jnp.take semantics; also guarantees in-range one-hot).
    flat_idx = jnp.clip(x.reshape(-1).astype(jnp.int32), 0, V - 1)
    if N_pad != N:
        flat_idx = jnp.pad(flat_idx, (0, N_pad - N))
    idx2d = flat_idx.reshape(N_pad, 1)

    table_p = table if D_pad == D else jnp.pad(table, ((0, 0), (0, D_pad - D)))

    def kernel(idx_ref, table_ref, out_ref):
        idx = idx_ref[...]                                        # (R, 1) i32
        iota = jax.lax.broadcasted_iota(jnp.int32, (R, V), 1)     # (R, V)
        one_hot = (idx == iota).astype(table_ref.dtype)           # (R, V)
        out = jnp.dot(one_hot, table_ref[...],
                      preferred_element_type=jnp.float32,
                      precision=jax.lax.Precision.HIGHEST)
        out_ref[...] = out.astype(out_ref.dtype)

    itemsize = jnp.dtype(table.dtype).itemsize
    table_bytes = V * D_pad * itemsize
    per_step_bytes = R * (D_pad * itemsize + V * itemsize + D_pad * 4 + 4)
    vmem_limit = int(min(max(table_bytes + 4 * per_step_bytes + (2 << 20),
                             8 << 20),
                         64 << 20))

    out = pl.pallas_call(
        kernel,
        out_shape=jax.ShapeDtypeStruct((N_pad, D_pad), table.dtype),
        grid_spec=pltpu.PrefetchScalarGridSpec(
            num_scalar_prefetch=0,
            grid=(n_steps,),
            in_specs=[
                pl.BlockSpec((R, 1), lambda i: (i, 0)),        # index block
                pl.BlockSpec((V, D_pad), lambda i: (0, 0)),    # resident table
            ],
            out_specs=pl.BlockSpec((R, D_pad), lambda i: (i, 0)),
        ),
        compiler_params=pltpu.CompilerParams(
            dimension_semantics=("parallel",),
            vmem_limit_bytes=vmem_limit),
        cost_estimate=pl.CostEstimate(
            flops=2 * N_pad * V * D_pad,
            transcendentals=0,
            bytes_accessed=N_pad * 4 + table_bytes + N_pad * D_pad * itemsize),
    )(idx2d, table_p)

    return out[:N, :D].reshape(B, F, D)


# ----------------------------------------------------------------------------
# Fallback path (table too large for VMEM): scalar-prefetch DMA row gather.
# ----------------------------------------------------------------------------
def _embedding_dma_gather(table, x, *, rows_per_step=64):
    B, F = x.shape
    V, D = table.shape
    N = B * F
    itemsize = jnp.dtype(table.dtype).itemsize

    R = max(8, min(_round_up(rows_per_step, 8), _round_up(N, 8)))
    n_steps = pl.cdiv(N, R)
    N_pad = n_steps * R

    flat_idx = jnp.clip(x.reshape(-1).astype(jnp.int32), 0, V - 1)
    if N_pad != N:
        flat_idx = jnp.pad(flat_idx, (0, N_pad - N))

    def kernel(idx_ref, *refs):
        del idx_ref                      # only drives the index_maps
        out_ref = refs[R]
        for r in range(R):
            out_ref[pl.ds(r, 1), :] = refs[r][...]

    def row_map(r):
        return lambda i, idx: (idx[i * R + r], 0)

    out = pl.pallas_call(
        kernel,
        out_shape=jax.ShapeDtypeStruct((N_pad, D), table.dtype),
        grid_spec=pltpu.PrefetchScalarGridSpec(
            num_scalar_prefetch=1,                        # flat_idx -> SMEM
            grid=(n_steps,),
            in_specs=[pl.BlockSpec((1, D), row_map(r)) for r in range(R)],
            out_specs=pl.BlockSpec((R, D), lambda i, idx: (i, 0)),
        ),
        compiler_params=pltpu.CompilerParams(
            dimension_semantics=("parallel",)),
        cost_estimate=pl.CostEstimate(
            flops=0, transcendentals=0,
            bytes_accessed=2 * N * D * itemsize + N * 4),
    )(flat_idx, *([table] * R))

    return out[:N].reshape(B, F, D)


# ----------------------------------------------------------------------------
# Public wrapper: Pallas equivalent of torch.nn.Embedding(V, D)(x).
# ----------------------------------------------------------------------------
def features_embedding(table, x, *, block_rows=256,
                       resident_table_bytes=8 * 1024 * 1024):
    """table: (V, D) float weight; x: (B, F) int indices -> (B, F, D)."""
    V, D = table.shape
    D_pad = _round_up(max(D, 128), 128)
    itemsize = jnp.dtype(table.dtype).itemsize
    if V * D_pad * itemsize <= resident_table_bytes:
        return _embedding_resident(table, x, block_rows=block_rows)
    # TODO(synk): the huge-vocab fallback is still latency-bound (one row DMA
    # per index); a manual deep-prefetch DMA ring would be the next step.
    return _embedding_dma_gather(table, x, rows_per_step=64)


def reference(table, x):
    """Pure-JAX reference: plain embedding lookup."""
    return jnp.take(table, x, axis=0)


if __name__ == "__main__":
    # Small shapes consistent with the module: batch=2, num_fields=4,
    # vocabulary_size=32, embed_dim=32.
    B, F, V, D = 2, 4, 32, 32
    key = jax.random.PRNGKey(0)
    k_table, k_idx = jax.random.split(key)

    table = jax.random.normal(k_table, (V, D), jnp.float32)
    x = jax.random.randint(k_idx, (B, F), 0, V, dtype=jnp.int32)

    out = features_embedding(table, x)
    jax.block_until_ready(out)

    ref = reference(table, x)
    assert out.shape == (B, F, D)
    assert out.dtype == table.dtype
    assert jnp.allclose(out, ref, atol=1e-6, rtol=1e-6)
    print("KERNEL_OK")
</pallas_src>

<mosaic_0001>
module attributes {stable_mosaic.version = 11 : i64} {
  func.func @kernel(%arg0: i32, %arg1: memref<8x1xi32, #tpu.memory_space<vmem>>, %arg2: memref<32x128xf32, #tpu.memory_space<vmem>>, %arg3: memref<8x128xf32, #tpu.memory_space<vmem>>) attributes {dimension_semantics = [#tpu.dimension_semantics<parallel>], iteration_bounds = array<i64: 1>, scalar_prefetch = 0 : i64, scratch_operands = 0 : i64, tpu.core_type = #tpu.core_type<tc>, window_params = [{transform_indices = @transform_0, window_bounds = array<i64: 8, 1>}, {pipeline_mode = #tpu.pipeline_mode<synchronous>, transform_indices = @transform_1, window_bounds = array<i64: 32, 128>}, {transform_indices = @transform_2, window_bounds = array<i64: 8, 128>}]} {
    %c0 = arith.constant 0 : index
    %c0_0 = arith.constant 0 : index
    %0 = vector.load %arg1[%c0, %c0_0] : memref<8x1xi32, #tpu.memory_space<vmem>>, vector<8x1xi32>
    %1 = tpu.iota {dimensions = array<i32: 1>} : vector<8x32xi32>
    %2 = vector.broadcast %0 : vector<8x1xi32> to vector<8x32xi32>
    %3 = arith.cmpi eq, %2, %1 : vector<8x32xi32>
    %4 = arith.extui %3 : vector<8x32xi1> to vector<8x32xi32>
    %5 = arith.sitofp %4 : vector<8x32xi32> to vector<8x32xf32>
    %c0_1 = arith.constant 0 : index
    %c0_2 = arith.constant 0 : index
    %6 = vector.load %arg2[%c0_1, %c0_2] : memref<32x128xf32, #tpu.memory_space<vmem>>, vector<32x128xf32>
    %cst = arith.constant dense<0.000000e+00> : vector<8x128xf32>
    %7 = tpu.matmul %5, %6, %cst {dimension_numbers = #tpu.dot_dimension_numbers<[1], [0], [0], [1], [0, 0, 1, 1], [], []>, precision = #tpu.contract_precision<fp32>} : vector<8x32xf32>, vector<32x128xf32>, vector<8x128xf32> -> vector<8x128xf32>
    %c0_3 = arith.constant 0 : index
    %c0_4 = arith.constant 0 : index
    %8 = vector.load %arg3[%c0_3, %c0_4] : memref<8x128xf32, #tpu.memory_space<vmem>>, vector<8x128xf32>
    tpu.vector_store %arg3[%c0_3, %c0_4], %7 {strides = array<i32>} : memref<8x128xf32, #tpu.memory_space<vmem>>, vector<8x128xf32>,
    return
  }
  func.func @transform_0(%arg0: i32) -> (i32, i32) {
    %c0_i32 = arith.constant 0 : i32
    %c0_i32_0 = arith.constant 0 : i32
    return %arg0, %c0_i32 : i32, i32
  }
  func.func @transform_1(%arg0: i32) -> (i32, i32) {
    %c0_i32 = arith.constant 0 : i32
    %c0_i32_0 = arith.constant 0 : i32
    %c0_i32_1 = arith.constant 0 : i32
    return %c0_i32, %c0_i32_0 : i32, i32
  }
  func.func @transform_2(%arg0: i32) -> (i32, i32) {
    %c0_i32 = arith.constant 0 : i32
    %c0_i32_0 = arith.constant 0 : i32
    return %arg0, %c0_i32 : i32, i32
  }
}

</mosaic_0001>

<llo_original>
// kernel: tpu_custom_call.1
$region0: #{tpu_custom_call.1}
  #allocation0 [shape = 'u32[]', space=smem, size = 0x4, offset = 0x4, fixed_abs, tag = 'smem constant byte address 0x4 - core index']
  #allocation1 [shape = 'u32[144,128]{1,0:T(1,128)}', space=vmem, size = 0x12000, scoped, tag = 'internal scratch']
  %s0 = inlined_call_operand.vmem [shape: s32[8,1], index: 0, kind: input, shape index: {}]
  %s1 = inlined_call_operand.hbm [shape: f32[32,128], index: 1, kind: input, shape index: {}]
  %s2 = inlined_call_operand.hbm [shape: f32[8,128], index: 2, kind: output, shape index: {}]
  %s3 = sld [smem:[#allocation0]]
  $region22: #{tpu_custom_call.1} parent=0
    _
  %s5 = ssub.s32 1, %s3
  %s6 = scalar_select 0, %s5, %s3
  $region1: #{tpu_custom_call.1} parent=0
    #allocation2 [shape = 'u8[16384]{0}', space=vmem, size = 0x4000, scoped, tag = 'input window, operand 1, single buffered']
    #allocation3 [shape = 's32[1]{0}', space=sflag, size = 0x4, scoped, tag = 'scoped memory for tpu_custom_call.1']
    #allocation4 [shape = 's32[1]{0}', space=sflag, size = 0x4, scoped, tag = 'scoped memory for tpu_custom_call.1']
    #allocation5 [shape = 'u8[4096]{0}', space=vmem, size = 0x1000, scoped, tag = 'output window, operand 0, single buffered']
    %7 = vsyncpa [#allocation3], 0
    %8 = vsyncpa [#allocation4], 0
    // Predicated region
    $region2: #{tpu_custom_call.1} parent=1 // pred_check
      _
    $region3: #{tpu_custom_call.1} parent=1 // pred_check_branch
      %10 = sbr.rel (0) target = $region5
    $region4: #{tpu_custom_call.1} parent=1 // pred_region
      _
    $region5: #{tpu_custom_call.1} parent=1 // pred_fallthru
      _
    // Predicated region
    $region6: #{tpu_custom_call.1} parent=1 // pred_check
      _
    $region7: #{tpu_custom_call.1} parent=1 // pred_check_branch
      %12 = sbr.rel (0) target = $region9
    $region8: #{tpu_custom_call.1} parent=1 // pred_region
      %s14 = ssub.s32 512, 512
      %15 = vsyncadd [#allocation3], %s14
      %s16 = sshll.u32 [#allocation2], 4
      %s17 = int_to_ptr.vmem [resolvable:$true] %s16
      %22 = dma.hbm_to_vmem [thread:$0]  %s1, 512, %s17, [#allocation3], 128, 128, 8
    $region9: #{tpu_custom_call.1} parent=1 // pred_fallthru
      _
    // Predicated region
    $region10: #{tpu_custom_call.1} parent=1 // pred_check
      _
    $region11: #{tpu_custom_call.1} parent=1 // pred_check_branch
      %24 = sbr.rel (0) target = $region13
    $region12: #{tpu_custom_call.1} parent=1 // pred_region
      %25 = dma.done [#allocation3], 512
    $region13: #{tpu_custom_call.1} parent=1 // pred_fallthru
      _
    %v26 = vld [vmem:[%s0] sm:$0xff]
    %v27 = vlaneseq
    %v28 = vand.u32 %v27, 127
    %29 = vset.pattern.permute.xlu0 0
    %30 = vperm.xlu0 %29, %v26
    %v31 = vpop.permute.xlu0 %30
    %vm32 = vcmp.eq.s32.totalorder %v31, %v28
    %v33 = vsel %vm32, 1, 0
    %v34 = vcvt.s32.f32 %v33
    %v35 = vld [vmem:[#allocation2] sm:$0xff]
    %v36 = vld [vmem:[#allocation2 + $0x8] sm:$0xff]
    %v37 = vld [vmem:[#allocation2 + $0x10] sm:$0xff]
    %v38 = vld [vmem:[#allocation2 + $0x18] sm:$0xff]
    %vm39 = vcmask 261120
    %v41 = vsel %vm39, %v34, 0
    %43 = vmatprep.subr.mxu0 0.0
    %v44 = vand.u32 %v35, 4294901760
    %45 = vmatpush1.msra.mxu0 %v44
    %46 = vmatprep.subr.mxu0 0.0
    %v47 = vand.u32 %v36, 4294901760
    %48 = vmatpush1.msra.mxu0 %v47
    %49 = vmatprep.subr.mxu0 0.0
    %v50 = vand.u32 %v37, 4294901760
    %51 = vmatpush1.msra.mxu0 %v50
    %52 = vmatprep.subr.mxu0 0.0
    %v53 = vand.u32 %v38, 4294901760
    %54 = vmatpush1.msra.mxu0 %v53
    %55 = vmatprep.subr.mxu0 0.0
    %56 = vmatpush1.msra.mxu0 0.0
    %57 = vmatprep.subr.mxu0 0.0
    %58 = vmatpush1.msra.mxu0 0.0
    %59 = vmatprep.subr.mxu0 0.0
    %60 = vmatpush1.msra.mxu0 0.0
    %61 = vmatprep.subr.mxu0 0.0
    %62 = vmatpush1.msra.mxu0 0.0
    %63 = vmatprep.subr.mxu0 0.0
    %64 = vmatpush1.msra.mxu0 0.0
    %65 = vmatprep.subr.mxu0 0.0
    %66 = vmatpush1.msra.mxu0 0.0
    %67 = vmatprep.subr.mxu0 0.0
    %68 = vmatpush1.msra.mxu0 0.0
    %69 = vmatprep.subr.mxu0 0.0
    %70 = vmatpush1.msra.mxu0 0.0
    %71 = vmatprep.subr.mxu0 0.0
    %72 = vmatpush1.msra.mxu0 0.0
    %73 = vmatprep.subr.mxu0 0.0
    %74 = vmatpush1.msra.mxu0 0.0
    %75 = vmatprep.subr.mxu0 0.0
    %76 = vmatpush1.msra.mxu0 0.0
    %77 = vmatprep.subr.mxu0 0.0
    %78 = vmatpush1.msra.mxu0 0.0
    %79 = vmatprep.subr.mxu0 0.0
    %80 = vmatpush1.msra.mxu0 0.0
    %81 = vmatprep.subr.mxu0 0.0
    %82 = vmatpush1.msra.mxu0 0.0
    %83 = vmatprep.subr.mxu0 0.0
    %84 = vmatpush1.msra.mxu0 0.0
    %85 = vmatprep.subr.mxu0 0.0
    %86 = vmatpush1.msra.mxu0 0.0
    %87 = vmatprep.subr.mxu0 0.0
    %88 = vmatpush1.msra.mxu0 0.0
    %89 = vmatprep.subr.mxu0 0.0
    %90 = vmatpush1.msra.mxu0 0.0
    %91 = vmatprep.subr.mxu0 0.0
    %92 = vmatpush1.msra.mxu0 0.0
    %93 = vmatprep.subr.mxu0 0.0
    %94 = vmatpush1.msra.mxu0 0.0
    %95 = vmatprep.subr.mxu0 0.0
    %96 = vmatpush1.msra.mxu0 0.0
    %97 = vmatprep.subr.mxu0 0.0
    %98 = vmatpush1.msra.mxu0 0.0
    %99 = vmatprep.subr.mxu0 0.0
    %100 = vmatpush1.msra.mxu0 0.0
    %101 = vmatprep.subr.mxu0 0.0
    %102 = vmatpush1.msra.mxu0 0.0
    %103 = vmatprep.subr.mxu0 0.0
    %104 = vmatpush1.msra.mxu0 0.0
    %105 = vmatprep.subr.mxu0 0.0
    %106 = vmatpush1.msra.mxu0 0.0
    %107 = vmatprep.subr.mxu0 0.0
    %108 = vmatpush1.msra.mxu0 0.0
    %109 = vmatprep.subr.mxu0 0.0
    %110 = vmatpush1.msra.mxu0 0.0
    %111 = vmatprep.mubr.f32.mxu0 0.0
    %v112 = vand.u32 %v41, 4294901760
    %v113 = vsub.f32 %v41, %v112
    %v114 = vand.u32 %v113, 4294901760
    %v115 = vsub.f32 %v113, %v114
    %v116 = vand.u32 %v115, 4294901760
    %117 = vmatmul.mubr.f32.gmra.mrb[0].mxu0 %v116
    %v118 = vpop.f32.mrb[0].mxu0
    %v119 = vadd.f32 0.0, %v118
    %v120 = vpop.f32.mrb[0].mxu0
    %121 = vdwg.mxu0
    %122 = vmatprep.subr.mxu0 0.0
    %v123 = vand.u32 %v35, 4294901760
    %v124 = vsub.f32 %v35, %v123
    %v125 = vand.u32 %v124, 4294901760
    %v126 = vsub.f32 %v124, %v125
    %v127 = vand.u32 %v126, 4294901760
    %128 = vmatpush1.msra.mxu0 %v127
    %129 = vmatprep.subr.mxu0 0.0
    %v130 = vand.u32 %v36, 4294901760
    %v131 = vsub.f32 %v36, %v130
    %v132 = vand.u32 %v131, 4294901760
    %v133 = vsub.f32 %v131, %v132
    %v134 = vand.u32 %v133, 4294901760
    %135 = vmatpush1.msra.mxu0 %v134
    %136 = vmatprep.subr.mxu0 0.0
    %v137 = vand.u32 %v37, 4294901760
    %v138 = vsub.f32 %v37, %v137
    %v139 = vand.u32 %v138, 4294901760
    %v140 = vsub.f32 %v138, %v139
    %v141 = vand.u32 %v140, 4294901760
    %142 = vmatpush1.msra.mxu0 %v141
    %143 = vmatprep.subr.mxu0 0.0
    %v144 = vand.u32 %v38, 4294901760
    %v145 = vsub.f32 %v38, %v144
    %v146 = vand.u32 %v145, 4294901760
    %v147 = vsub.f32 %v145, %v146
    %v148 = vand.u32 %v147, 4294901760
    %149 = vmatpush1.msra.mxu0 %v148
    %150 = vmatprep.subr.mxu0 0.0
    %151 = vmatpush1.msra.mxu0 0.0
    %152 = vmatprep.subr.mxu0 0.0
    %153 = vmatpush1.msra.mxu0 0.0
    %154 = vmatprep.subr.mxu0 0.0
    %155 = vmatpush1.msra.mxu0 0.0
    %156 = vmatprep.subr.mxu0 0.0
    %157 = vmatpush1.msra.mxu0 0.0
    %158 = vmatprep.subr.mxu0 0.0
    %159 = vmatpush1.msra.mxu0 0.0
    %160 = vmatprep.subr.mxu0 0.0
    %161 = vmatpush1.msra.mxu0 0.0
    %162 = vmatprep.subr.mxu0 0.0
    %163 = vmatpush1.msra.mxu0 0.0
    %164 = vmatprep.subr.mxu0 0.0
    %165 = vmatpush1.msra.mxu0 0.0
    %166 = vmatprep.subr.mxu0 0.0
    %167 = vmatpush1.msra.mxu0 0.0
    %168 = vmatprep.subr.mxu0 0.0
    %169 = vmatpush1.msra.mxu0 0.0
    %170 = vmatprep.subr.mxu0 0.0
    %171 = vmatpush1.msra.mxu0 0.0
    %172 = vmatprep.subr.mxu0 0.0
    %173 = vmatpush1.msra.mxu0 0.0
    %174 = vmatprep.subr.mxu0 0.0
    %175 = vmatpush1.msra.mxu0 0.0
    %176 = vmatprep.subr.mxu0 0.0
    %177 = vmatpush1.msra.mxu0 0.0
    %178 = vmatprep.subr.mxu0 0.0
    %179 = vmatpush1.msra.mxu0 0.0
    %180 = vmatprep.subr.mxu0 0.0
    %181 = vmatpush1.msra.mxu0 0.0
    %182 = vmatprep.subr.mxu0 0.0
    %183 = vmatpush1.msra.mxu0 0.0
    %184 = vmatprep.subr.mxu0 0.0
    %185 = vmatpush1.msra.mxu0 0.0
    %186 = vmatprep.subr.mxu0 0.0
    %187 = vmatpush1.msra.mxu0 0.0
    %188 = vmatprep.subr.mxu0 0.0
    %189 = vmatpush1.msra.mxu0 0.0
    %190 = vmatprep.subr.mxu0 0.0
    %191 = vmatpush1.msra.mxu0 0.0
    %192 = vmatprep.subr.mxu0 0.0
    %193 = vmatpush1.msra.mxu0 0.0
    %194 = vmatprep.subr.mxu0 0.0
    %195 = vmatpush1.msra.mxu0 0.0
    %196 = vmatprep.subr.mxu0 0.0
    %197 = vmatpush1.msra.mxu0 0.0
    %198 = vmatprep.subr.mxu0 0.0
    %199 = vmatpush1.msra.mxu0 0.0
    %200 = vmatprep.subr.mxu0 0.0
    %201 = vmatpush1.msra.mxu0 0.0
    %202 = vmatprep.subr.mxu0 0.0
    %203 = vmatpush1.msra.mxu0 0.0
    %204 = vmatprep.subr.mxu0 0.0
    %205 = vmatpush1.msra.mxu0 0.0
    %206 = vmatprep.mubr.f32.mxu0 0.0
    %v207 = vand.u32 %v41, 4294901760
    %208 = vmatmul.mubr.f32.gmra.mrb[0].mxu0 %v207
    %v209 = vpop.f32.mrb[0].mxu0
    %v210 = vadd.f32 %v119, %v209
    %v211 = vpop.f32.mrb[0].mxu0
    %212 = vdwg.mxu0
    %213 = vmatprep.subr.mxu0 0.0
    %v214 = vand.u32 %v35, 4294901760
    %v215 = vsub.f32 %v35, %v214
    %216 = vmatpush1.msra.mxu0 %v215
    %217 = vmatprep.subr.mxu0 0.0
    %v218 = vand.u32 %v36, 4294901760
    %v219 = vsub.f32 %v36, %v218
    %220 = vmatpush1.msra.mxu0 %v219
    %221 = vmatprep.subr.mxu0 0.0
    %v222 = vand.u32 %v37, 4294901760
    %v223 = vsub.f32 %v37, %v222
    %224 = vmatpush1.msra.mxu0 %v223
    %225 = vmatprep.subr.mxu0 0.0
    %v226 = vand.u32 %v38, 4294901760
    %v227 = vsub.f32 %v38, %v226
    %228 = vmatpush1.msra.mxu0 %v227
    %229 = vmatprep.subr.mxu0 0.0
    %230 = vmatpush1.msra.mxu0 0.0
    %231 = vmatprep.subr.mxu0 0.0
    %232 = vmatpush1.msra.mxu0 0.0
    %233 = vmatprep.subr.mxu0 0.0
    %234 = vmatpush1.msra.mxu0 0.0
    %235 = vmatprep.subr.mxu0 0.0
    %236 = vmatpush1.msra.mxu0 0.0
    %237 = vmatprep.subr.mxu0 0.0
    %238 = vmatpush1.msra.mxu0 0.0
    %239 = vmatprep.subr.mxu0 0.0
    %240 = vmatpush1.msra.mxu0 0.0
    %241 = vmatprep.subr.mxu0 0.0
    %242 = vmatpush1.msra.mxu0 0.0
    %243 = vmatprep.subr.mxu0 0.0
    %244 = vmatpush1.msra.mxu0 0.0
    %245 = vmatprep.subr.mxu0 0.0
    %246 = vmatpush1.msra.mxu0 0.0
    %247 = vmatprep.subr.mxu0 0.0
    %248 = vmatpush1.msra.mxu0 0.0
    %249 = vmatprep.subr.mxu0 0.0
    %250 = vmatpush1.msra.mxu0 0.0
    %251 = vmatprep.subr.mxu0 0.0
    %252 = vmatpush1.msra.mxu0 0.0
    %253 = vmatprep.subr.mxu0 0.0
    %254 = vmatpush1.msra.mxu0 0.0
    %255 = vmatprep.subr.mxu0 0.0
    %256 = vmatpush1.msra.mxu0 0.0
    %257 = vmatprep.subr.mxu0 0.0
    %258 = vmatpush1.msra.mxu0 0.0
    %259 = vmatprep.subr.mxu0 0.0
    %260 = vmatpush1.msra.mxu0 0.0
    %261 = vmatprep.subr.mxu0 0.0
    %262 = vmatpush1.msra.mxu0 0.0
    %263 = vmatprep.subr.mxu0 0.0
    %264 = vmatpush1.msra.mxu0 0.0
    %265 = vmatprep.subr.mxu0 0.0
    %266 = vmatpush1.msra.mxu0 0.0
    %267 = vmatprep.subr.mxu0 0.0
    %268 = vmatpush1.msra.mxu0 0.0
    %269 = vmatprep.subr.mxu0 0.0
    %270 = vmatpush1.msra.mxu0 0.0
    %271 = vmatprep.subr.mxu0 0.0
    %272 = vmatpush1.msra.mxu0 0.0
    %273 = vmatprep.subr.mxu0 0.0
    %274 = vmatpush1.msra.mxu0 0.0
    %275 = vmatprep.subr.mxu0 0.0
    %276 = vmatpush1.msra.mxu0 0.0
    %277 = vmatprep.subr.mxu0 0.0
    %278 = vmatpush1.msra.mxu0 0.0
    %279 = vmatprep.subr.mxu0 0.0
    %280 = vmatpush1.msra.mxu0 0.0
    %281 = vmatprep.subr.mxu0 0.0
    %282 = vmatpush1.msra.mxu0 0.0
    %283 = vmatprep.subr.mxu0 0.0
    %284 = vmatpush1.msra.mxu0 0.0
    %285 = vmatprep.mubr.f32.mxu0 0.0
    %v286 = vand.u32 %v41, 4294901760
    %v287 = vsub.f32 %v41, %v286
    %288 = vmatmul.mubr.f32.gmra.mrb[0].mxu0 %v287
    %v289 = vpop.f32.mrb[0].mxu0
    %v290 = vadd.f32 %v210, %v289
    %v291 = vpop.f32.mrb[0].mxu0
    %292 = vdwg.mxu0
    %293 = vmatprep.subr.mxu0 0.0
    %v294 = vand.u32 %v35, 4294901760
    %295 = vmatpush1.msra.mxu0 %v294
    %296 = vmatprep.subr.mxu0 0.0
    %v297 = vand.u32 %v36, 4294901760
    %298 = vmatpush1.msra.mxu0 %v297
    %299 = vmatprep.subr.mxu0 0.0
    %v300 = vand.u32 %v37, 4294901760
    %301 = vmatpush1.msra.mxu0 %v300
    %302 = vmatprep.subr.mxu0 0.0
    %v303 = vand.u32 %v38, 4294901760
    %304 = vmatpush1.msra.mxu0 %v303
    %305 = vmatprep.subr.mxu0 0.0
    %306 = vmatpush1.msra.mxu0 0.0
    %307 = vmatprep.subr.mxu0 0.0
    %308 = vmatpush1.msra.mxu0 0.0
    %309 = vmatprep.subr.mxu0 0.0
    %310 = vmatpush1.msra.mxu0 0.0
    %311 = vmatprep.subr.mxu0 0.0
    %312 = vmatpush1.msra.mxu0 0.0
    %313 = vmatprep.subr.mxu0 0.0
    %314 = vmatpush1.msra.mxu0 0.0
    %315 = vmatprep.subr.mxu0 0.0
    %316 = vmatpush1.msra.mxu0 0.0
    %317 = vmatprep.subr.mxu0 0.0
    %318 = vmatpush1.msra.mxu0 0.0
    %319 = vmatprep.subr.mxu0 0.0
    %320 = vmatpush1.msra.mxu0 0.0
    %321 = vmatprep.subr.mxu0 0.0
    %322 = vmatpush1.msra.mxu0 0.0
    %323 = vmatprep.subr.mxu0 0.0
    %324 = vmatpush1.msra.mxu0 0.0
    %325 = vmatprep.subr.mxu0 0.0
    %326 = vmatpush1.msra.mxu0 0.0
    %327 = vmatprep.subr.mxu0 0.0
    %328 = vmatpush1.msra.mxu0 0.0
    %329 = vmatprep.subr.mxu0 0.0
    %330 = vmatpush1.msra.mxu0 0.0
    %331 = vmatprep.subr.mxu0 0.0
    %332 = vmatpush1.msra.mxu0 0.0
    %333 = vmatprep.subr.mxu0 0.0
    %334 = vmatpush1.msra.mxu0 0.0
    %335 = vmatprep.subr.mxu0 0.0
    %336 = vmatpush1.msra.mxu0 0.0
    %337 = vmatprep.subr.mxu0 0.0
    %338 = vmatpush1.msra.mxu0 0.0
    %339 = vmatprep.subr.mxu0 0.0
    %340 = vmatpush1.msra.mxu0 0.0
    %341 = vmatprep.subr.mxu0 0.0
    %342 = vmatpush1.msra.mxu0 0.0
    %343 = vmatprep.subr.mxu0 0.0
    %344 = vmatpush1.msra.mxu0 0.0
    %345 = vmatprep.subr.mxu0 0.0
    %346 = vmatpush1.msra.mxu0 0.0
    %347 = vmatprep.subr.mxu0 0.0
    %348 = vmatpush1.msra.mxu0 0.0
    %349 = vmatprep.subr.mxu0 0.0
    %350 = vmatpush1.msra.mxu0 0.0
    %351 = vmatprep.subr.mxu0 0.0
    %352 = vmatpush1.msra.mxu0 0.0
    %353 = vmatprep.subr.mxu0 0.0
    %354 = vmatpush1.msra.mxu0 0.0
    %355 = vmatprep.subr.mxu0 0.0
    %356 = vmatpush1.msra.mxu0 0.0
    %357 = vmatprep.subr.mxu0 0.0
    %358 = vmatpush1.msra.mxu0 0.0
    %359 = vmatprep.subr.mxu0 0.0
    %360 = vmatpush1.msra.mxu0 0.0
    %361 = vmatprep.mubr.f32.mxu0 0.0
    %v362 = vand.u32 %v41, 4294901760
    %v363 = vsub.f32 %v41, %v362
    %v364 = vand.u32 %v363, 4294901760
    %365 = vmatmul.mubr.f32.gmra.mrb[0].mxu0 %v364
    %v366 = vpop.f32.mrb[0].mxu0
    %v367 = vadd.f32 %v290, %v366
    %v368 = vpop.f32.mrb[0].mxu0
    %369 = vdwg.mxu0
    %370 = vmatprep.subr.mxu0 0.0
    %v371 = vand.u32 %v35, 4294901760
    %v372 = vsub.f32 %v35, %v371
    %v373 = vand.u32 %v372, 4294901760
    %374 = vmatpush1.msra.mxu0 %v373
    %375 = vmatprep.subr.mxu0 0.0
    %v376 = vand.u32 %v36, 4294901760
    %v377 = vsub.f32 %v36, %v376
    %v378 = vand.u32 %v377, 4294901760
    %379 = vmatpush1.msra.mxu0 %v378
    %380 = vmatprep.subr.mxu0 0.0
    %v381 = vand.u32 %v37, 4294901760
    %v382 = vsub.f32 %v37, %v381
    %v383 = vand.u32 %v382, 4294901760
    %384 = vmatpush1.msra.mxu0 %v383
    %385 = vmatprep.subr.mxu0 0.0
    %v386 = vand.u32 %v38, 4294901760
    %v387 = vsub.f32 %v38, %v386
    %v388 = vand.u32 %v387, 4294901760
    %389 = vmatpush1.msra.mxu0 %v388
    %390 = vmatprep.subr.mxu0 0.0
    %391 = vmatpush1.msra.mxu0 0.0
    %392 = vmatprep.subr.mxu0 0.0
    %393 = vmatpush1.msra.mxu0 0.0
    %394 = vmatprep.subr.mxu0 0.0
    %395 = vmatpush1.msra.mxu0 0.0
    %396 = vmatprep.subr.mxu0 0.0
    %397 = vmatpush1.msra.mxu0 0.0
    %398 = vmatprep.subr.mxu0 0.0
    %399 = vmatpush1.msra.mxu0 0.0
    %400 = vmatprep.subr.mxu0 0.0
    %401 = vmatpush1.msra.mxu0 0.0
    %402 = vmatprep.subr.mxu0 0.0
    %403 = vmatpush1.msra.mxu0 0.0
    %404 = vmatprep.subr.mxu0 0.0
    %405 = vmatpush1.msra.mxu0 0.0
    %406 = vmatprep.subr.mxu0 0.0
    %407 = vmatpush1.msra.mxu0 0.0
    %408 = vmatprep.subr.mxu0 0.0
    %409 = vmatpush1.msra.mxu0 0.0
    %410 = vmatprep.subr.mxu0 0.0
    %411 = vmatpush1.msra.mxu0 0.0
    %412 = vmatprep.subr.mxu0 0.0
    %413 = vmatpush1.msra.mxu0 0.0
    %414 = vmatprep.subr.mxu0 0.0
    %415 = vmatpush1.msra.mxu0 0.0
    %416 = vmatprep.subr.mxu0 0.0
    %417 = vmatpush1.msra.mxu0 0.0
    %418 = vmatprep.subr.mxu0 0.0
    %419 = vmatpush1.msra.mxu0 0.0
    %420 = vmatprep.subr.mxu0 0.0
    %421 = vmatpush1.msra.mxu0 0.0
    %422 = vmatprep.subr.mxu0 0.0
    %423 = vmatpush1.msra.mxu0 0.0
    %424 = vmatprep.subr.mxu0 0.0
    %425 = vmatpush1.msra.mxu0 0.0
    %426 = vmatprep.subr.mxu0 0.0
    %427 = vmatpush1.msra.mxu0 0.0
    %428 = vmatprep.subr.mxu0 0.0
    %429 = vmatpush1.msra.mxu0 0.0
    %430 = vmatprep.subr.mxu0 0.0
    %431 = vmatpush1.msra.mxu0 0.0
    %432 = vmatprep.subr.mxu0 0.0
    %433 = vmatpush1.msra.mxu0 0.0
    %434 = vmatprep.subr.mxu0 0.0
    %435 = vmatpush1.msra.mxu0 0.0
    %436 = vmatprep.subr.mxu0 0.0
    %437 = vmatpush1.msra.mxu0 0.0
    %438 = vmatprep.subr.mxu0 0.0
    %439 = vmatpush1.msra.mxu0 0.0
    %440 = vmatprep.subr.mxu0 0.0
    %441 = vmatpush1.msra.mxu0 0.0
    %442 = vmatprep.subr.mxu0 0.0
    %443 = vmatpush1.msra.mxu0 0.0
    %444 = vmatprep.subr.mxu0 0.0
    %445 = vmatpush1.msra.mxu0 0.0
    %446 = vmatprep.mubr.f32.mxu0 0.0
    %v447 = vand.u32 %v41, 4294901760
    %448 = vmatmul.mubr.f32.gmra.mrb[0].mxu0 %v447
    %v449 = vpop.f32.mrb[0].mxu0
    %v450 = vadd.f32 %v367, %v449
    %v451 = vpop.f32.mrb[0].mxu0
    %452 = vdwg.mxu0
    %453 = vmatprep.subr.mxu0 0.0
    %v454 = vand.u32 %v35, 4294901760
    %455 = vmatpush1.msra.mxu0 %v454
    %456 = vmatprep.subr.mxu0 0.0
    %v457 = vand.u32 %v36, 4294901760
    %458 = vmatpush1.msra.mxu0 %v457
    %459 = vmatprep.subr.mxu0 0.0
    %v460 = vand.u32 %v37, 4294901760
    %461 = vmatpush1.msra.mxu0 %v460
    %462 = vmatprep.subr.mxu0 0.0
    %v463 = vand.u32 %v38, 4294901760
    %464 = vmatpush1.msra.mxu0 %v463
    %465 = vmatprep.subr.mxu0 0.0
    %466 = vmatpush1.msra.mxu0 0.0
    %467 = vmatprep.subr.mxu0 0.0
    %468 = vmatpush1.msra.mxu0 0.0
    %469 = vmatprep.subr.mxu0 0.0
    %470 = vmatpush1.msra.mxu0 0.0
    %471 = vmatprep.subr.mxu0 0.0
    %472 = vmatpush1.msra.mxu0 0.0
    %473 = vmatprep.subr.mxu0 0.0
    %474 = vmatpush1.msra.mxu0 0.0
    %475 = vmatprep.subr.mxu0 0.0
    %476 = vmatpush1.msra.mxu0 0.0
    %477 = vmatprep.subr.mxu0 0.0
    %478 = vmatpush1.msra.mxu0 0.0
    %479 = vmatprep.subr.mxu0 0.0
    %480 = vmatpush1.msra.mxu0 0.0
    %481 = vmatprep.subr.mxu0 0.0
    %482 = vmatpush1.msra.mxu0 0.0
    %483 = vmatprep.subr.mxu0 0.0
    %484 = vmatpush1.msra.mxu0 0.0
    %485 = vmatprep.subr.mxu0 0.0
    %486 = vmatpush1.msra.mxu0 0.0
    %487 = vmatprep.subr.mxu0 0.0
    %488 = vmatpush1.msra.mxu0 0.0
    %489 = vmatprep.subr.mxu0 0.0
    %490 = vmatpush1.msra.mxu0 0.0
    %491 = vmatprep.subr.mxu0 0.0
    %492 = vmatpush1.msra.mxu0 0.0
    %493 = vmatprep.subr.mxu0 0.0
    %494 = vmatpush1.msra.mxu0 0.0
    %495 = vmatprep.subr.mxu0 0.0
    %496 = vmatpush1.msra.mxu0 0.0
    %497 = vmatprep.subr.mxu0 0.0
    %498 = vmatpush1.msra.mxu0 0.0
    %499 = vmatprep.subr.mxu0 0.0
    %500 = vmatpush1.msra.mxu0 0.0
    %501 = vmatprep.subr.mxu0 0.0
    %502 = vmatpush1.msra.mxu0 0.0
    %503 = vmatprep.subr.mxu0 0.0
    %504 = vmatpush1.msra.mxu0 0.0
    %505 = vmatprep.subr.mxu0 0.0
    %506 = vmatpush1.msra.mxu0 0.0
    %507 = vmatprep.subr.mxu0 0.0
    %508 = vmatpush1.msra.mxu0 0.0
    %509 = vmatprep.subr.mxu0 0.0
    %510 = vmatpush1.msra.mxu0 0.0
    %511 = vmatprep.subr.mxu0 0.0
    %512 = vmatpush1.msra.mxu0 0.0
    %513 = vmatprep.subr.mxu0 0.0
    %514 = vmatpush1.msra.mxu0 0.0
    %515 = vmatprep.subr.mxu0 0.0
    %516 = vmatpush1.msra.mxu0 0.0
    %517 = vmatprep.subr.mxu0 0.0
    %518 = vmatpush1.msra.mxu0 0.0
    %519 = vmatprep.subr.mxu0 0.0
    %520 = vmatpush1.msra.mxu0 0.0
    %521 = vmatprep.mubr.f32.mxu0 0.0
    %v522 = vand.u32 %v41, 4294901760
    %523 = vmatmul.mubr.f32.gmra.mrb[0].mxu0 %v522
    %v524 = vpop.f32.mrb[0].mxu0
    %v525 = vadd.f32 %v450, %v524
    %v526 = vpop.f32.mrb[0].mxu0
    %527 = vdwg.mxu0
    %528 = vst [vmem:[#allocation5] sm:$0xff] %v525
    // Predicated region
    $region14: #{tpu_custom_call.1} parent=1 // pred_check
      _
    $region15: #{tpu_custom_call.1} parent=1 // pred_check_branch
      %530 = sbr.rel (0) target = $region17
    $region16: #{tpu_custom_call.1} parent=1 // pred_region
      %s532 = ssub.s32 128, 128
      %533 = vsyncadd [#allocation4], %s532
      %s535 = sshll.u32 [#allocation5], 4
      %s536 = int_to_ptr.vmem [resolvable:$true] %s535
      %538 = dma.vmem_to_hbm [thread:$0]  %s536, 128, %s2, [#allocation4]
    $region17: #{tpu_custom_call.1} parent=1 // pred_fallthru
      _
    // Predicated region
    $region18: #{tpu_custom_call.1} parent=1 // pred_check
      _
    $region19: #{tpu_custom_call.1} parent=1 // pred_check_branch
      %540 = sbr.rel (0) target = $region21
    $region20: #{tpu_custom_call.1} parent=1 // pred_region
      %541 = dma.done [#allocation4], 128
    $region21: #{tpu_custom_call.1} parent=1 // pred_fallthru
      _
    %542 = vsyncpa [#allocation3], 1
    %543 = vsyncpa [#allocation4], 1

</llo_original>
